<compile_context>
chip_gen: v6e
topology: v6e:2x2x1
jax: 0.10.0
libtpu: 0.0.40
codegen_flags: <defaults>
</compile_context>

<pallas_src>
import math

import jax
import jax.numpy as jnp
from jax.experimental import pallas as pl
from jax.experimental.pallas import tpu as pltpu


_MASK_NEG = -1e30  # finite large-negative additive mask bias (no NaN risk)


def _round_up(x, m):
    return ((x + m - 1) // m) * m


# ---------------------------------------------------------------------------
# SelfAttentionPooling kernel: online softmax over sequence chunks.
# Computes the normalized attention context (before V-bias / out-projection,
# which are folded into the classifier).
# ---------------------------------------------------------------------------
def _attn_pool_kernel(emb_ref, mask_ref, wks_ref, wv_t_ref, seg_t_ref,
                      out_ref, m_acc, l_acc, ctx_acc):
    blk_b, s_tile, H = emb_ref.shape
    nh = wks_ref.shape[1]
    s_idx = pl.program_id(1)

    @pl.when(s_idx == 0)
    def _():
        m_acc[...] = jnp.full(m_acc.shape, -1e38, dtype=jnp.float32)
        l_acc[...] = jnp.zeros(l_acc.shape, dtype=jnp.float32)
        ctx_acc[...] = jnp.zeros(ctx_acc.shape, dtype=jnp.float32)

    emb2d = emb_ref[...].reshape(blk_b * s_tile, H)                  # bf16

    # Attention scores: learned query, Wq, bq, Wk and 1/sqrt(head_dim) are
    # pre-folded into wks (bf16 MXU operands, f32 accumulation).
    scores2d = jnp.dot(emb2d, wks_ref[...],
                       preferred_element_type=jnp.float32)           # (BB*T, nh)
    scores = (scores2d.reshape(blk_b, s_tile, nh)
              + mask_ref[...][:, :, None])                           # + pad mask

    # Online softmax over the sequence axis.
    m_chunk = jnp.max(scores, axis=1)                                # (BB, nh)
    m_new = jnp.maximum(m_acc[...], m_chunk)
    alpha = jnp.exp(m_acc[...] - m_new)                              # (BB, nh)
    p = jnp.exp(scores - m_new[:, None, :])                          # (BB, T, nh) f32

    l_acc[...] = alpha * l_acc[...] + jnp.sum(p, axis=1)
    m_acc[...] = m_new

    seg_f32 = seg_t_ref[...]                                         # (nh, H)
    seg_bf = seg_f32.astype(jnp.bfloat16)

    # V projection for this chunk (dominant MXU matmul, bf16 operands).
    v = jnp.dot(emb2d, wv_t_ref[...],
                preferred_element_type=jnp.float32)                  # (BB*T, H)

    # Broadcast per-head probs to that head's features, weight V, reduce over T.
    p_full = jnp.dot(p.reshape(blk_b * s_tile, nh).astype(jnp.bfloat16),
                     seg_bf, preferred_element_type=jnp.float32)     # (BB*T, H)
    ctx_chunk = jnp.sum((p_full * v).reshape(blk_b, s_tile, H), axis=1)

    alpha_full = jnp.dot(alpha, seg_f32,
                         preferred_element_type=jnp.float32)         # (BB, H)
    ctx_acc[...] = alpha_full * ctx_acc[...] + ctx_chunk

    @pl.when(s_idx == pl.num_programs(1) - 1)
    def _():
        inv_l = pl.reciprocal(l_acc[...], approx=True)               # (BB, nh)
        inv_full = jnp.dot(inv_l, seg_f32,
                           preferred_element_type=jnp.float32)       # (BB, H)
        out_ref[...] = (ctx_acc[...] * inv_full).astype(out_ref.dtype)


def _fold_pool_params(pool_params, num_heads, H):
    """Fold query / Wq / bq / Wk / scale into one (H, nh) score matrix."""
    head_dim = H // num_heads
    scale = 1.0 / math.sqrt(head_dim)
    in_w = pool_params["in_proj_weight"].astype(jnp.float32)         # (3H, H)
    in_b = pool_params["in_proj_bias"].astype(jnp.float32)           # (3H,)
    wq, wk, wv = in_w[:H], in_w[H:2 * H], in_w[2 * H:]
    bq = in_b[:H]
    query = pool_params["query"].reshape(1, H).astype(jnp.float32)

    # seg[d, h] = 1 iff feature d belongs to head h.
    seg = (jnp.arange(H)[:, None] // head_dim ==
           jnp.arange(num_heads)[None, :]).astype(jnp.float32)       # (H, nh)

    q_proj = query @ wq.T + bq[None, :]                              # (1, H)
    wks = ((wk.T * q_proj) @ seg) * scale                            # (H, nh)
    # NOTE: the bk·q per-head constant is dropped: softmax is shift-invariant
    # per head, so it cannot change the attention weights.
    return wks, wv.T, seg.T                                          # (H,nh),(H,H),(nh,H)


def attention_pool_context(embeddings, attention_mask, wks, wv_t, seg_t, *,
                           block_b=8, block_s=512):
    """embeddings: (B, S, H); attention_mask: (B, S) (1 keep / 0 pad) or None.

    Returns the normalized attention context (B, H) in f32 — V bias and the
    output projection are applied later (folded into the classifier).
    """
    B, S, H = embeddings.shape
    nh = wks.shape[1]

    if attention_mask is None:
        attention_mask = jnp.ones((B, S), dtype=jnp.int32)

    # Batch blocking (small blocks: bounded padding, megacore-friendly).
    blk_b = _round_up(min(block_b, _round_up(B, 8)), 8)
    Bp = _round_up(B, blk_b)

    # Sequence blocking (mask lane-dim must be a multiple of 128 or full S).
    S8 = _round_up(S, 8)
    if S8 <= block_s:
        s_tile = S8
    else:
        s_tile = max(128, (block_s // 128) * 128)
        budget = 40 * 1024 * 1024
        per_row = blk_b * (12 * H + 64)        # f32 v + p_full + 2x bf16 emb per pos
        fit = max(128, (budget // max(per_row, 1)) // 128 * 128)
        s_tile = min(s_tile, fit)
    Sp = _round_up(S, s_tile)
    ns = Sp // s_tile

    emb = embeddings.astype(jnp.bfloat16)                            # bf16 MXU stream
    mask_bias = jnp.where(attention_mask.astype(jnp.float32) > 0.0,
                          jnp.float32(0.0), jnp.float32(_MASK_NEG))  # (B, S)
    if (Bp, Sp) != (B, S):
        emb = jnp.pad(emb, ((0, Bp - B), (0, Sp - S), (0, 0)))
        mask_bias = jnp.pad(mask_bias, ((0, Bp - B), (0, Sp - S)),
                            constant_values=_MASK_NEG)

    grid_spec = pltpu.PrefetchScalarGridSpec(
        num_scalar_prefetch=0,
        grid=(Bp // blk_b, ns),
        in_specs=[
            pl.BlockSpec((blk_b, s_tile, H), lambda b, s: (b, s, 0)),   # embeddings
            pl.BlockSpec((blk_b, s_tile), lambda b, s: (b, s)),         # mask bias
            pl.BlockSpec((H, nh), lambda b, s: (0, 0)),                 # wks (folded)
            pl.BlockSpec((H, H), lambda b, s: (0, 0)),                  # Wv^T
            pl.BlockSpec((nh, H), lambda b, s: (0, 0)),                 # seg^T
        ],
        out_specs=pl.BlockSpec((blk_b, H), lambda b, s: (b, 0)),
        scratch_shapes=[
            pltpu.VMEM((blk_b, nh), jnp.float32),    # running max
            pltpu.VMEM((blk_b, nh), jnp.float32),    # running denom
            pltpu.VMEM((blk_b, H), jnp.float32),     # running context
        ],
    )

    out = pl.pallas_call(
        _attn_pool_kernel,
        out_shape=jax.ShapeDtypeStruct((Bp, H), jnp.float32),
        grid_spec=grid_spec,
        compiler_params=pltpu.CompilerParams(
            dimension_semantics=("parallel", "arbitrary"),
            vmem_limit_bytes=48 * 1024 * 1024),
    )(
        emb, mask_bias,
        wks.astype(jnp.bfloat16),
        wv_t.astype(jnp.bfloat16),
        seg_t.astype(jnp.float32),
    )
    return out[:B]


# ---------------------------------------------------------------------------
# Classifier head with the pooler's V bias / out-projection folded in:
#   pooled = ctx @ Wo^T + (bv @ Wo^T + bo)
#   h      = relu([pooled_ref, pooled_alt] @ W1^T + b1)
#   logits = h @ W2^T + b2
# Dropout(0.1) is identity at inference.
# ---------------------------------------------------------------------------
def _classifier_kernel(xr_ref, xa_ref, w1r_t_ref, w1a_t_ref, b1_ref,
                       w2_t_ref, b2_ref, out_ref):
    h = (jnp.dot(xr_ref[...], w1r_t_ref[...], preferred_element_type=jnp.float32)
         + jnp.dot(xa_ref[...], w1a_t_ref[...], preferred_element_type=jnp.float32)
         + b1_ref[...])
    h = jnp.maximum(h, 0.0)
    # TODO(synk): nn.Dropout(0.1) is identity at inference; not modelled here.
    out = jnp.dot(h.astype(w2_t_ref.dtype), w2_t_ref[...],
                  preferred_element_type=jnp.float32) + b2_ref[...]
    out_ref[...] = out.astype(out_ref.dtype)


def _fold_classifier_params(pool_params, clf_params, H):
    in_w = pool_params["in_proj_weight"].astype(jnp.float32)
    in_b = pool_params["in_proj_bias"].astype(jnp.float32)
    bv = in_b[2 * H:]
    wo = pool_params["out_proj_weight"].astype(jnp.float32)          # (H, H)
    bo = pool_params["out_proj_bias"].astype(jnp.float32)            # (H,)
    w1 = clf_params["w1"].astype(jnp.float32)                        # (H, 2H)
    b1 = clf_params["b1"].astype(jnp.float32)                        # (H,)
    w2 = clf_params["w2"].astype(jnp.float32)                        # (C, H)
    b2 = clf_params["b2"].astype(jnp.float32)                        # (C,)

    c = bv @ wo.T + bo                                               # pooled bias
    w1r, w1a = w1[:, :H], w1[:, H:]
    w1r_f = w1r @ wo                                                 # (H, H)
    w1a_f = w1a @ wo                                                 # (H, H)
    b1_f = b1 + c @ w1r.T + c @ w1a.T                                # (H,)
    return w1r_f.T, w1a_f.T, b1_f, w2.T, b2                          # transposed for x@W


def classifier_head(ctx_ref, ctx_alt, folded, *, block_rows=256):
    w1r_t, w1a_t, b1_f, w2_t, b2 = folded
    B, H = ctx_ref.shape
    C = w2_t.shape[1]

    blk = _round_up(min(block_rows, _round_up(B, 8)), 8)
    Bp = _round_up(B, blk)
    xr = ctx_ref.astype(jnp.bfloat16)
    xa = ctx_alt.astype(jnp.bfloat16)
    if Bp != B:
        xr = jnp.pad(xr, ((0, Bp - B), (0, 0)))
        xa = jnp.pad(xa, ((0, Bp - B), (0, 0)))

    grid_spec = pltpu.PrefetchScalarGridSpec(
        num_scalar_prefetch=0,
        grid=(Bp // blk,),
        in_specs=[
            pl.BlockSpec((blk, H), lambda i: (i, 0)),
            pl.BlockSpec((blk, H), lambda i: (i, 0)),
            pl.BlockSpec((H, H), lambda i: (0, 0)),
            pl.BlockSpec((H, H), lambda i: (0, 0)),
            pl.BlockSpec((1, H), lambda i: (0, 0)),
            pl.BlockSpec((H, C), lambda i: (0, 0)),
            pl.BlockSpec((1, C), lambda i: (0, 0)),
        ],
        out_specs=pl.BlockSpec((blk, C), lambda i: (i, 0)),
    )
    out = pl.pallas_call(
        _classifier_kernel,
        out_shape=jax.ShapeDtypeStruct((Bp, C), jnp.float32),
        grid_spec=grid_spec,
        compiler_params=pltpu.CompilerParams(
            dimension_semantics=("parallel",)),
    )(
        xr, xa,
        w1r_t.astype(jnp.bfloat16), w1a_t.astype(jnp.bfloat16),
        b1_f.reshape(1, H).astype(jnp.float32),
        w2_t.astype(jnp.bfloat16),
        b2.reshape(1, C).astype(jnp.float32),
    )
    return out[:B]


# ---------------------------------------------------------------------------
# DNAClassifierModel.forward (minus the pretrained DNA backbone)
# ---------------------------------------------------------------------------
def dna_classifier_forward(ref_hidden, alt_hidden, ref_mask, alt_mask,
                           pool_params, clf_params, *, num_heads,
                           block_b=8, block_s=512):
    # TODO(synk): the pretrained DNA model (AutoModelForMaskedLM / Evo2) has no
    # Pallas equivalent; ref_hidden/alt_hidden stand in for its hidden states.
    _, _, H = ref_hidden.shape
    wks, wv_t, seg_t = _fold_pool_params(pool_params, num_heads, H)

    # Two separate pooling calls (no HBM concat of the (B, S, H) hidden states).
    ctx_ref = attention_pool_context(ref_hidden, ref_mask, wks, wv_t, seg_t,
                                     block_b=block_b, block_s=block_s)
    ctx_alt = attention_pool_context(alt_hidden, alt_mask, wks, wv_t, seg_t,
                                     block_b=block_b, block_s=block_s)

    folded = _fold_classifier_params(pool_params, clf_params, H)
    return classifier_head(ctx_ref, ctx_alt, folded)                 # (B, C)


# ---------------------------------------------------------------------------
# Pure-JAX reference (replicates PyTorch nn.MultiheadAttention + classifier)
# ---------------------------------------------------------------------------
def _pool_reference(embeddings, attention_mask, params, *, num_heads):
    B, S, H = embeddings.shape
    hd = H // num_heads
    in_w, in_b = params["in_proj_weight"], params["in_proj_bias"]
    wq, wk, wv = in_w[:H], in_w[H:2 * H], in_w[2 * H:]
    bq, bk, bv = in_b[:H], in_b[H:2 * H], in_b[2 * H:]
    q = jnp.broadcast_to(params["query"].reshape(1, 1, H), (B, 1, H))
    qp = q @ wq.T + bq
    kp = embeddings @ wk.T + bk
    vp = embeddings @ wv.T + bv
    qh = qp.reshape(B, 1, num_heads, hd).transpose(0, 2, 1, 3)
    kh = kp.reshape(B, S, num_heads, hd).transpose(0, 2, 1, 3)
    vh = vp.reshape(B, S, num_heads, hd).transpose(0, 2, 1, 3)
    scores = jnp.einsum("bhqd,bhkd->bhqk", qh, kh) / math.sqrt(hd)
    if attention_mask is not None:
        pad = (attention_mask == 0)[:, None, None, :]
        scores = jnp.where(pad, -jnp.inf, scores)
    attn = jax.nn.softmax(scores, axis=-1)
    ctx = jnp.einsum("bhqk,bhkd->bhqd", attn, vh)
    ctx = ctx.transpose(0, 2, 1, 3).reshape(B, 1, H)
    out = ctx @ params["out_proj_weight"].T + params["out_proj_bias"]
    return out[:, 0, :]


def _forward_reference(ref_h, alt_h, ref_m, alt_m, pool_params, clf_params, *,
                       num_heads):
    ref_e = _pool_reference(ref_h, ref_m, pool_params, num_heads=num_heads)
    alt_e = _pool_reference(alt_h, alt_m, pool_params, num_heads=num_heads)
    combined = jnp.concatenate([ref_e, alt_e], axis=1)
    h = jnp.maximum(combined @ clf_params["w1"].T + clf_params["b1"], 0.0)
    return h @ clf_params["w2"].T + clf_params["b2"]


if __name__ == "__main__":
    B, S, H, NH, C = 2, 8, 32, 8, 2

    key = jax.random.PRNGKey(0)
    ks = jax.random.split(key, 10)

    ref_hidden = jax.random.normal(ks[0], (B, S, H), jnp.float32)
    alt_hidden = jax.random.normal(ks[1], (B, S, H), jnp.float32)
    ref_mask = jnp.array([[1] * S, [1] * (S - 2) + [0, 0]], dtype=jnp.int32)
    alt_mask = jnp.array([[1] * (S - 1) + [0], [1] * S], dtype=jnp.int32)

    pool_params = {
        "in_proj_weight": jax.random.normal(ks[2], (3 * H, H), jnp.float32) * 0.1,
        "in_proj_bias": jax.random.normal(ks[3], (3 * H,), jnp.float32) * 0.1,
        "out_proj_weight": jax.random.normal(ks[4], (H, H), jnp.float32) * 0.1,
        "out_proj_bias": jax.random.normal(ks[5], (H,), jnp.float32) * 0.1,
        "query": jax.random.normal(ks[6], (1, 1, H), jnp.float32),
    }
    clf_params = {
        "w1": jax.random.normal(ks[7], (H, 2 * H), jnp.float32) * 0.1,
        "b1": jax.random.normal(ks[8], (H,), jnp.float32) * 0.1,
        "w2": jax.random.normal(ks[9], (C, H), jnp.float32) * 0.1,
        "b2": jnp.zeros((C,), jnp.float32),
    }

    logits = dna_classifier_forward(ref_hidden, alt_hidden, ref_mask, alt_mask,
                                    pool_params, clf_params, num_heads=NH)
    logits = jax.block_until_ready(logits)

    ref_logits = _forward_reference(ref_hidden, alt_hidden, ref_mask, alt_mask,
                                    pool_params, clf_params, num_heads=NH)

    assert logits.shape == (B, C)
    max_err = float(jnp.max(jnp.abs(logits - ref_logits)))
    # bf16 MXU operands + approx reciprocal -> looser tolerance than pure f32.
    assert jnp.allclose(logits, ref_logits, atol=3e-2, rtol=3e-2), \
        f"mismatch vs reference (max abs err {max_err})"

    print("KERNEL_OK")
</pallas_src>

<mosaic_0001>
module attributes {stable_mosaic.version = 11 : i64} {
  func.func @_attn_pool_kernel(%arg0: i32, %arg1: i32, %arg2: memref<8x8x32xbf16, #tpu.memory_space<vmem>>, %arg3: memref<8x8xf32, #tpu.memory_space<vmem>>, %arg4: memref<32x8xbf16, #tpu.memory_space<vmem>>, %arg5: memref<32x32xbf16, #tpu.memory_space<vmem>>, %arg6: memref<8x32xf32, #tpu.memory_space<vmem>>, %arg7: memref<8x32xf32, #tpu.memory_space<vmem>>, %arg8: memref<8x8xf32, #tpu.memory_space<vmem>>, %arg9: memref<8x8xf32, #tpu.memory_space<vmem>>, %arg10: memref<8x32xf32, #tpu.memory_space<vmem>>) attributes {dimension_semantics = [#tpu.dimension_semantics<parallel>, #tpu.dimension_semantics<arbitrary>], iteration_bounds = array<i64: 1, 1>, scalar_prefetch = 0 : i64, scratch_operands = 3 : i64, tpu.core_type = #tpu.core_type<tc>, window_params = [{transform_indices = @transform_0, window_bounds = array<i64: 8, 8, 32>}, {transform_indices = @transform_1, window_bounds = array<i64: 8, 8>}, {pipeline_mode = #tpu.pipeline_mode<synchronous>, transform_indices = @transform_2, window_bounds = array<i64: 32, 8>}, {pipeline_mode = #tpu.pipeline_mode<synchronous>, transform_indices = @transform_3, window_bounds = array<i64: 32, 32>}, {pipeline_mode = #tpu.pipeline_mode<synchronous>, transform_indices = @transform_4, window_bounds = array<i64: 8, 32>}, {transform_indices = @transform_5, window_bounds = array<i64: 8, 32>}]} {
    %c0_i32 = arith.constant 0 : i32
    %0 = arith.cmpi eq, %arg1, %c0_i32 : i32
    %1 = arith.extui %0 : i1 to i32
    %c0_i32_0 = arith.constant 0 : i32
    %2 = arith.cmpi ne, %1, %c0_i32_0 : i32
    scf.if %2 {
      %cst_33 = arith.constant -9.99999968E+37 : f32
      %46 = vector.broadcast %cst_33 : f32 to vector<8x8xf32>
      %c0_34 = arith.constant 0 : index
      %c0_35 = arith.constant 0 : index
      %47 = vector.load %arg8[%c0_34, %c0_35] : memref<8x8xf32, #tpu.memory_space<vmem>>, vector<8x8xf32>
      tpu.vector_store %arg8[%c0_34, %c0_35], %46 {strides = array<i32>} : memref<8x8xf32, #tpu.memory_space<vmem>>, vector<8x8xf32>,
      %cst_36 = arith.constant 0.000000e+00 : f32
      %48 = vector.broadcast %cst_36 : f32 to vector<8x8xf32>
      %c0_37 = arith.constant 0 : index
      %c0_38 = arith.constant 0 : index
      %49 = vector.load %arg9[%c0_37, %c0_38] : memref<8x8xf32, #tpu.memory_space<vmem>>, vector<8x8xf32>
      tpu.vector_store %arg9[%c0_37, %c0_38], %48 {strides = array<i32>} : memref<8x8xf32, #tpu.memory_space<vmem>>, vector<8x8xf32>,
      %cst_39 = arith.constant 0.000000e+00 : f32
      %50 = vector.broadcast %cst_39 : f32 to vector<8x32xf32>
      %c0_40 = arith.constant 0 : index
      %c0_41 = arith.constant 0 : index
      %51 = vector.load %arg10[%c0_40, %c0_41] : memref<8x32xf32, #tpu.memory_space<vmem>>, vector<8x32xf32>
      tpu.vector_store %arg10[%c0_40, %c0_41], %50 {strides = array<i32>} : memref<8x32xf32, #tpu.memory_space<vmem>>, vector<8x32xf32>,
    } else {
    }
    %c0 = arith.constant 0 : index
    %c0_1 = arith.constant 0 : index
    %c0_2 = arith.constant 0 : index
    %3 = vector.load %arg2[%c0, %c0_1, %c0_2] : memref<8x8x32xbf16, #tpu.memory_space<vmem>>, vector<8x8x32xbf16>
    %4 = vector.shape_cast %3 : vector<8x8x32xbf16> to vector<64x32xbf16>
    %c0_3 = arith.constant 0 : index
    %c0_4 = arith.constant 0 : index
    %5 = vector.load %arg4[%c0_3, %c0_4] : memref<32x8xbf16, #tpu.memory_space<vmem>>, vector<32x8xbf16>
    %cst = arith.constant dense<0.000000e+00> : vector<64x8xf32>
    %6 = tpu.matmul %4, %5, %cst {dimension_numbers = #tpu.dot_dimension_numbers<[1], [0], [0], [1], [0, 0, 1, 1], [], []>} : vector<64x32xbf16>, vector<32x8xbf16>, vector<64x8xf32> -> vector<64x8xf32>
    %7 = vector.shape_cast %6 : vector<64x8xf32> to vector<8x8x8xf32>
    %c0_5 = arith.constant 0 : index
    %c0_6 = arith.constant 0 : index
    %8 = vector.load %arg3[%c0_5, %c0_6] : memref<8x8xf32, #tpu.memory_space<vmem>>, vector<8x8xf32>
    %9 = vector.shape_cast %8 : vector<8x8xf32> to vector<8x8x1xf32>
    %10 = vector.broadcast %9 : vector<8x8x1xf32> to vector<8x8x8xf32>
    %11 = arith.addf %7, %10 : vector<8x8x8xf32>
    %cst_7 = arith.constant dense<0xFF800000> : vector<8x8xf32>
    %12 = vector.multi_reduction <maximumf>, %11, %cst_7 [1] : vector<8x8x8xf32> to vector<8x8xf32>
    %c0_8 = arith.constant 0 : index
    %c0_9 = arith.constant 0 : index
    %13 = vector.load %arg8[%c0_8, %c0_9] : memref<8x8xf32, #tpu.memory_space<vmem>>, vector<8x8xf32>
    %14 = arith.maximumf %13, %12 : vector<8x8xf32>
    %c0_10 = arith.constant 0 : index
    %c0_11 = arith.constant 0 : index
    %15 = vector.load %arg8[%c0_10, %c0_11] : memref<8x8xf32, #tpu.memory_space<vmem>>, vector<8x8xf32>
    %16 = arith.subf %15, %14 : vector<8x8xf32>
    %17 = math.exp %16 : vector<8x8xf32>
    %18 = vector.shape_cast %14 : vector<8x8xf32> to vector<8x1x8xf32>
    %19 = vector.broadcast %18 : vector<8x1x8xf32> to vector<8x8x8xf32>
    %20 = arith.subf %11, %19 : vector<8x8x8xf32>
    %21 = math.exp %20 : vector<8x8x8xf32>
    %c0_12 = arith.constant 0 : index
    %c0_13 = arith.constant 0 : index
    %22 = vector.load %arg9[%c0_12, %c0_13] : memref<8x8xf32, #tpu.memory_space<vmem>>, vector<8x8xf32>
    %23 = arith.mulf %17, %22 : vector<8x8xf32>
    %cst_14 = arith.constant dense<0.000000e+00> : vector<8x8xf32>
    %24 = vector.multi_reduction <add>, %21, %cst_14 [1] : vector<8x8x8xf32> to vector<8x8xf32>
    %25 = arith.addf %23, %24 : vector<8x8xf32>
    %c0_15 = arith.constant 0 : index
    %c0_16 = arith.constant 0 : index
    %26 = vector.load %arg9[%c0_15, %c0_16] : memref<8x8xf32, #tpu.memory_space<vmem>>, vector<8x8xf32>
    tpu.vector_store %arg9[%c0_15, %c0_16], %25 {strides = array<i32>} : memref<8x8xf32, #tpu.memory_space<vmem>>, vector<8x8xf32>,
    %c0_17 = arith.constant 0 : index
    %c0_18 = arith.constant 0 : index
    %27 = vector.load %arg8[%c0_17, %c0_18] : memref<8x8xf32, #tpu.memory_space<vmem>>, vector<8x8xf32>
    tpu.vector_store %arg8[%c0_17, %c0_18], %14 {strides = array<i32>} : memref<8x8xf32, #tpu.memory_space<vmem>>, vector<8x8xf32>,
    %c0_19 = arith.constant 0 : index
    %c0_20 = arith.constant 0 : index
    %28 = vector.load %arg6[%c0_19, %c0_20] : memref<8x32xf32, #tpu.memory_space<vmem>>, vector<8x32xf32>
    %29 = arith.truncf %28 : vector<8x32xf32> to vector<8x32xbf16>
    %c0_21 = arith.constant 0 : index
    %c0_22 = arith.constant 0 : index
    %30 = vector.load %arg5[%c0_21, %c0_22] : memref<32x32xbf16, #tpu.memory_space<vmem>>, vector<32x32xbf16>
    %cst_23 = arith.constant dense<0.000000e+00> : vector<64x32xf32>
    %31 = tpu.matmul %4, %30, %cst_23 {dimension_numbers = #tpu.dot_dimension_numbers<[1], [0], [0], [1], [0, 0, 1, 1], [], []>} : vector<64x32xbf16>, vector<32x32xbf16>, vector<64x32xf32> -> vector<64x32xf32>
    %32 = vector.shape_cast %21 : vector<8x8x8xf32> to vector<64x8xf32>
    %33 = arith.truncf %32 : vector<64x8xf32> to vector<64x8xbf16>
    %cst_24 = arith.constant dense<0.000000e+00> : vector<64x32xf32>
    %34 = tpu.matmul %33, %29, %cst_24 {dimension_numbers = #tpu.dot_dimension_numbers<[1], [0], [0], [1], [0, 0, 1, 1], [], []>} : vector<64x8xbf16>, vector<8x32xbf16>, vector<64x32xf32> -> vector<64x32xf32>
    %35 = arith.mulf %34, %31 : vector<64x32xf32>
    %36 = vector.shape_cast %35 : vector<64x32xf32> to vector<8x8x32xf32>
    %cst_25 = arith.constant dense<0.000000e+00> : vector<8x32xf32>
    %37 = vector.multi_reduction <add>, %36, %cst_25 [1] : vector<8x8x32xf32> to vector<8x32xf32>
    %cst_26 = arith.constant dense<0.000000e+00> : vector<8x32xf32>
    %38 = tpu.matmul %17, %28, %cst_26 {dimension_numbers = #tpu.dot_dimension_numbers<[1], [0], [0], [1], [0, 0, 1, 1], [], []>} : vector<8x8xf32>, vector<8x32xf32>, vector<8x32xf32> -> vector<8x32xf32>
    %c0_27 = arith.constant 0 : index
    %c0_28 = arith.constant 0 : index
    %39 = vector.load %arg10[%c0_27, %c0_28] : memref<8x32xf32, #tpu.memory_space<vmem>>, vector<8x32xf32>
    %40 = arith.mulf %38, %39 : vector<8x32xf32>
    %41 = arith.addf %40, %37 : vector<8x32xf32>
    %c0_29 = arith.constant 0 : index
    %c0_30 = arith.constant 0 : index
    %42 = vector.load %arg10[%c0_29, %c0_30] : memref<8x32xf32, #tpu.memory_space<vmem>>, vector<8x32xf32>
    tpu.vector_store %arg10[%c0_29, %c0_30], %41 {strides = array<i32>} : memref<8x32xf32, #tpu.memory_space<vmem>>, vector<8x32xf32>,
    %c0_i32_31 = arith.constant 0 : i32
    %43 = arith.cmpi eq, %arg1, %c0_i32_31 : i32
    %44 = arith.extui %43 : i1 to i32
    %c0_i32_32 = arith.constant 0 : i32
    %45 = arith.cmpi ne, %44, %c0_i32_32 : i32
    scf.if %45 {
      %c0_33 = arith.constant 0 : index
      %c0_34 = arith.constant 0 : index
      %46 = vector.load %arg9[%c0_33, %c0_34] : memref<8x8xf32, #tpu.memory_space<vmem>>, vector<8x8xf32>
      %47 = tpu.reciprocal %46 {approx = true} : vector<8x8xf32> -> vector<8x8xf32>
      %cst_35 = arith.constant dense<0.000000e+00> : vector<8x32xf32>
      %48 = tpu.matmul %47, %28, %cst_35 {dimension_numbers = #tpu.dot_dimension_numbers<[1], [0], [0], [1], [0, 0, 1, 1], [], []>} : vector<8x8xf32>, vector<8x32xf32>, vector<8x32xf32> -> vector<8x32xf32>
      %c0_36 = arith.constant 0 : index
      %c0_37 = arith.constant 0 : index
      %49 = vector.load %arg10[%c0_36, %c0_37] : memref<8x32xf32, #tpu.memory_space<vmem>>, vector<8x32xf32>
      %50 = arith.mulf %49, %48 : vector<8x32xf32>
      %c0_38 = arith.constant 0 : index
      %c0_39 = arith.constant 0 : index
      %51 = vector.load %arg7[%c0_38, %c0_39] : memref<8x32xf32, #tpu.memory_space<vmem>>, vector<8x32xf32>
      tpu.vector_store %arg7[%c0_38, %c0_39], %50 {strides = array<i32>} : memref<8x32xf32, #tpu.memory_space<vmem>>, vector<8x32xf32>,
    } else {
    }
    return
  }
  func.func @transform_0(%arg0: i32, %arg1: i32) -> (i32, i32, i32) {
    %c0_i32 = arith.constant 0 : i32
    %c0_i32_0 = arith.constant 0 : i32
    return %arg0, %arg1, %c0_i32 : i32, i32, i32
  }
  func.func @transform_1(%arg0: i32, %arg1: i32) -> (i32, i32) {
    %c0_i32 = arith.constant 0 : i32
    return %arg0, %arg1 : i32, i32
  }
  func.func @transform_2(%arg0: i32, %arg1: i32) -> (i32, i32) {
    %c0_i32 = arith.constant 0 : i32
    %c0_i32_0 = arith.constant 0 : i32
    %c0_i32_1 = arith.constant 0 : i32
    return %c0_i32, %c0_i32_0 : i32, i32
  }
  func.func @transform_3(%arg0: i32, %arg1: i32) -> (i32, i32) {
    %c0_i32 = arith.constant 0 : i32
    %c0_i32_0 = arith.constant 0 : i32
    %c0_i32_1 = arith.constant 0 : i32
    return %c0_i32, %c0_i32_0 : i32, i32
  }
  func.func @transform_4(%arg0: i32, %arg1: i32) -> (i32, i32) {
    %c0_i32 = arith.constant 0 : i32
    %c0_i32_0 = arith.constant 0 : i32
    %c0_i32_1 = arith.constant 0 : i32
    return %c0_i32, %c0_i32_0 : i32, i32
  }
  func.func @transform_5(%arg0: i32, %arg1: i32) -> (i32, i32) {
    %c0_i32 = arith.constant 0 : i32
    %c0_i32_0 = arith.constant 0 : i32
    return %arg0, %c0_i32 : i32, i32
  }
}

</mosaic_0001>

<llo_original>
// kernel: tpu_custom_call.1
$region0: #{tpu_custom_call.1}
  #allocation0 [shape = 'u32[]', space=smem, size = 0x4, offset = 0x4, fixed_abs, tag = 'smem constant byte address 0x4 - core index']
  #allocation1 [shape = 'u32[144,128]{1,0:T(1,128)}', space=vmem, size = 0x12000, scoped, tag = 'internal scratch']
  #allocation2 [shape = 'f32[8,8]{1,0:T(8,128)}', space=vmem, size = 0x1000, scoped, tag = 'scratch operand']
  #allocation3 [shape = 'f32[8,8]{1,0:T(8,128)}', space=vmem, size = 0x1000, scoped, tag = 'scratch operand']
  #allocation4 [shape = 'f32[8,32]{1,0:T(8,128)}', space=vmem, size = 0x1000, scoped, tag = 'scratch operand']
  %s0 = inlined_call_operand.hbm [shape: bf16[8,8,32], index: 0, kind: input, shape index: {}]
  %s1 = inlined_call_operand.vmem [shape: f32[8,8], index: 1, kind: input, shape index: {}]
  %s2 = inlined_call_operand.vmem [shape: bf16[32,8], index: 2, kind: input, shape index: {}]
  %s3 = inlined_call_operand.vmem [shape: bf16[32,32], index: 3, kind: input, shape index: {}]
  %s4 = inlined_call_operand.hbm [shape: f32[8,32], index: 4, kind: input, shape index: {}]
  %s5 = inlined_call_operand.hbm [shape: f32[8,32], index: 5, kind: output, shape index: {}]
  %s6 = sld [smem:[#allocation0]]
  $region46: #{tpu_custom_call.1} parent=0
    _
  %s8 = ssub.s32 1, %s6
  %s9 = scalar_select 0, %s8, %s6
  $region1: #{tpu_custom_call.1} parent=0
    #allocation5 [shape = 'u8[16384]{0}', space=vmem, size = 0x4000, scoped, tag = 'input window, operand 0, single buffered']
    #allocation6 [shape = 's32[1]{0}', space=sflag, size = 0x4, scoped, tag = 'scoped memory for tpu_custom_call.1']
    #allocation7 [shape = 's32[1]{0}', space=sflag, size = 0x4, scoped, tag = 'scoped memory for tpu_custom_call.1']
    #allocation8 [shape = 'u8[4096]{0}', space=vmem, size = 0x1000, scoped, tag = 'input window, operand 4, single buffered']
    #allocation9 [shape = 's32[1]{0}', space=sflag, size = 0x4, scoped, tag = 'scoped memory for tpu_custom_call.1']
    #allocation10 [shape = 'u8[4096]{0}', space=vmem, size = 0x1000, scoped, tag = 'output window, operand 0, single buffered']
    %10 = vsyncpa [#allocation6], 0
    %11 = vsyncpa [#allocation9], 0
    %12 = vsyncpa [#allocation7], 0
    // Predicated region
    $region2: #{tpu_custom_call.1} parent=1 // pred_check
      _
    $region3: #{tpu_custom_call.1} parent=1 // pred_check_branch
      %14 = sbr.rel (0) target = $region5
    $region4: #{tpu_custom_call.1} parent=1 // pred_region
      %s16 = ssub.s32 512, 512
      %17 = vsyncadd [#allocation6], %s16
      %s18 = sshll.u32 [#allocation5], 4
      %s19 = int_to_ptr.vmem [resolvable:$true] %s18
      %24 = dma.hbm_to_vmem [thread:$0]  %s0, 512, %s19, [#allocation6], 64, 64, 4
    $region5: #{tpu_custom_call.1} parent=1 // pred_fallthru
      _
    // Predicated region
    $region6: #{tpu_custom_call.1} parent=1 // pred_check
      _
    $region7: #{tpu_custom_call.1} parent=1 // pred_check_branch
      %26 = sbr.rel (0) target = $region9
    $region8: #{tpu_custom_call.1} parent=1 // pred_region
      _
    $region9: #{tpu_custom_call.1} parent=1 // pred_fallthru
      _
    // Predicated region
    $region10: #{tpu_custom_call.1} parent=1 // pred_check
      _
    $region11: #{tpu_custom_call.1} parent=1 // pred_check_branch
      %28 = sbr.rel (0) target = $region13
    $region12: #{tpu_custom_call.1} parent=1 // pred_region
      _
    $region13: #{tpu_custom_call.1} parent=1 // pred_fallthru
      _
    // Predicated region
    $region14: #{tpu_custom_call.1} parent=1 // pred_check
      _
    $region15: #{tpu_custom_call.1} parent=1 // pred_check_branch
      %30 = sbr.rel (0) target = $region17
    $region16: #{tpu_custom_call.1} parent=1 // pred_region
      _
    $region17: #{tpu_custom_call.1} parent=1 // pred_fallthru
      _
    // Predicated region
    $region18: #{tpu_custom_call.1} parent=1 // pred_check
      _
    $region19: #{tpu_custom_call.1} parent=1 // pred_check_branch
      %32 = sbr.rel (0) target = $region21
    $region20: #{tpu_custom_call.1} parent=1 // pred_region
      %s34 = ssub.s32 128, 128
      %35 = vsyncadd [#allocation9], %s34
      %s37 = sshll.u32 [#allocation8], 4
      %s38 = int_to_ptr.vmem [resolvable:$true] %s37
      %40 = dma.hbm_to_vmem [thread:$0]  %s4, 128, %s38, [#allocation9]
    $region21: #{tpu_custom_call.1} parent=1 // pred_fallthru
      _
    // Predicated region
    $region22: #{tpu_custom_call.1} parent=1 // pred_check
      _
    $region23: #{tpu_custom_call.1} parent=1 // pred_check_branch
      %42 = sbr.rel (0) target = $region25
    $region24: #{tpu_custom_call.1} parent=1 // pred_region
      %43 = dma.done [#allocation6], 512
    $region25: #{tpu_custom_call.1} parent=1 // pred_fallthru
      _
    // Predicated region
    $region26: #{tpu_custom_call.1} parent=1 // pred_check
      _
    $region27: #{tpu_custom_call.1} parent=1 // pred_check_branch
      %45 = sbr.rel (0) target = $region29
    $region28: #{tpu_custom_call.1} parent=1 // pred_region
      %46 = dma.done [#allocation9], 128
    $region29: #{tpu_custom_call.1} parent=1 // pred_fallthru
      _
    %p48 = scmp.eq.s32.totalorder 0, 0
    // Predicated region
    $region30: #{tpu_custom_call.1} parent=1 // pred_check
      %p49 = pneg %p48
    $region31: #{tpu_custom_call.1} parent=1 // pred_check_branch
      %51 = sbr.rel (%p49) target = $region33
    $region32: #{tpu_custom_call.1} parent=1 // pred_region
      %vm52 = vcmask 64512
      %53 = vst.msk [vmem:[#allocation2] sm:$0xff] %vm52, -1e+38
      %54 = vst.msk [vmem:[#allocation3] sm:$0xff] %vm52, 0.0
      %vm55 = vcmask 261120
      %56 = vst.msk [vmem:[#allocation4] sm:$0xff] %vm55, 0.0
    $region33: #{tpu_custom_call.1} parent=1 // pred_fallthru
      _
    %v57 = vld [vmem:[#allocation5] sm:$0xf]
    %v58 = vld [vmem:[#allocation5 + $0x4] sm:$0xf]
    %v59 = vld [vmem:[#allocation5 + $0x8] sm:$0xf]
    %v60 = vld [vmem:[#allocation5 + $0xc] sm:$0xf]
    %v61 = vld [vmem:[#allocation5 + $0x10] sm:$0xf]
    %v62 = vld [vmem:[#allocation5 + $0x14] sm:$0xf]
    %v63 = vld [vmem:[#allocation5 + $0x18] sm:$0xf]
    %v64 = vld [vmem:[#allocation5 + $0x1c] sm:$0xf]
    %v65 = vld [vmem:[%s2] sm:$0xf]
    %v66 = vld [vmem:[%s2 + $0x4] sm:$0xf]
    %v67 = vld [vmem:[%s2 + $0x8] sm:$0xf]
    %v68 = vld [vmem:[%s2 + $0xc] sm:$0xf]
    %v77 = vunpack.c.l.b16 %v57
    %v78 = vunpack.c.l.b16 %v58
    %v79 = vunpack.c.l.b16 %v59
    %v80 = vunpack.c.l.b16 %v60
    %v81 = vunpack.c.l.b16 %v61
    %v82 = vunpack.c.l.b16 %v62
    %v83 = vunpack.c.l.b16 %v63
    %v84 = vunpack.c.l.b16 %v64
    %v85 = vpack.c.b16 %v78, %v77
    %v86 = vpack.c.b16 %v80, %v79
    %v87 = vpack.c.b16 %v82, %v81
    %v88 = vpack.c.b16 %v84, %v83
    %v93 = vunpack.c.l.b16 %v65
    %v94 = vunpack.c.l.b16 %v66
    %v95 = vunpack.c.l.b16 %v67
    %v96 = vunpack.c.l.b16 %v68
    %v97 = vpack.c.b16 %v94, %v93
    %v98 = vpack.c.b16 %v96, %v95
    %vm101 = vcmask 261120
    %v103 = vsel %vm101, %v85, 0
    %v106 = vsel %vm101, %v86, 0
    %v109 = vsel %vm101, %v87, 0
    %v112 = vsel %vm101, %v88, 0
    %114 = vmatprep.subr.bf16.mxu0 0
    %115 = vmatpush1.bf16.msra.mxu0 0
    %116 = vmatprep.subr.bf16.mxu0 0
    %117 = vmatpush1.bf16.msra.mxu0 0
    %118 = vmatprep.subr.bf16.mxu0 0
    %119 = vmatpush1.bf16.msra.mxu0 0
    %120 = vmatprep.subr.bf16.mxu0 0
    %121 = vmatpush1.bf16.msra.mxu0 0
    %122 = vmatprep.subr.bf16.mxu0 0
    %123 = vmatpush1.bf16.msra.mxu0 0
    %124 = vmatprep.subr.bf16.mxu0 0
    %125 = vmatpush1.bf16.msra.mxu0 0
    %126 = vmatprep.subr.bf16.mxu0 0
    %127 = vmatpush1.bf16.msra.mxu0 %v98
    %128 = vmatprep.subr.bf16.mxu0 0
    %129 = vmatpush1.bf16.msra.mxu0 %v97
    %130 = vmatprep.subr.bf16.mxu0 0
    %131 = vmatpush2.bf16.msra.mxu0 0
    %132 = vmatprep.subr.bf16.mxu0 0
    %133 = vmatpush2.bf16.msra.mxu0 0
    %134 = vmatprep.subr.bf16.mxu0 0
    %135 = vmatpush2.bf16.msra.mxu0 0
    %136 = vmatprep.subr.bf16.mxu0 0
    %137 = vmatpush2.bf16.msra.mxu0 0
    %138 = vmatprep.subr.bf16.mxu0 0
    %139 = vmatpush2.bf16.msra.mxu0 0
    %140 = vmatprep.subr.bf16.mxu0 0
    %141 = vmatpush2.bf16.msra.mxu0 0
    %142 = vmatprep.subr.bf16.mxu0 0
    %143 = vmatpush2.bf16.msra.mxu0 0
    %144 = vmatprep.subr.bf16.mxu0 0
    %145 = vmatpush2.bf16.msra.mxu0 0
    %146 = vmatprep.mubr.bf16.mxu0 0
    %147 = vmatmul.mubr.bf16.gmra.mxu0 %v103
    %v148 = vpop.f32.mrf.mxu0
    %v149 = vadd.f32 0.0, %v148
    %v150 = vpop.f32.mrf.mxu0
    %v151 = vpop.f32.mrf.mxu0
    %v152 = vadd.f32 0.0, %v151
    %v153 = vpop.f32.mrf.mxu0
    %154 = vmatprep.mubr.bf16.mxu0 0
    %155 = vmatmul.mubr.bf16.gmra.mxu0 %v106
    %v156 = vpop.f32.mrf.mxu0
    %v157 = vadd.f32 0.0, %v156
    %v158 = vpop.f32.mrf.mxu0
    %v159 = vpop.f32.mrf.mxu0
    %v160 = vadd.f32 0.0, %v159
    %v161 = vpop.f32.mrf.mxu0
    %162 = vmatprep.mubr.bf16.mxu0 0
    %163 = vmatmul.mubr.bf16.gmra.mxu0 %v109
    %v164 = vpop.f32.mrf.mxu0
    %v165 = vadd.f32 0.0, %v164
    %v166 = vpop.f32.mrf.mxu0
    %v167 = vpop.f32.mrf.mxu0
    %v168 = vadd.f32 0.0, %v167
    %v169 = vpop.f32.mrf.mxu0
    %170 = vmatprep.mubr.bf16.mxu0 0
    %171 = vmatmul.mubr.bf16.gmra.mxu0 %v112
    %v172 = vpop.f32.mrf.mxu0
    %v173 = vadd.f32 0.0, %v172
    %v174 = vpop.f32.mrf.mxu0
    %v175 = vpop.f32.mrf.mxu0
    %v176 = vadd.f32 0.0, %v175
    %v177 = vpop.f32.mrf.mxu0
    %178 = vdwg.mxu0
    %v179 = vld [vmem:[%s1] sm:$0xff]
    %v180 = vlaneseq
    %v181 = vshrl.u32 %v180, 7
    %v182 = vsub.s32 0, %v181
    %v183 = vrot.slane %v179, %v182
    %185 = vbcast.lane.b32.xlu0 %v183, 256
    %v186 = vpop.permute.xlu0 %185
    %v187 = vlaneseq
    %v188 = vshrl.u32 %v187, 7
    %v189 = vsub.s32 1, %v188
    %v190 = vrot.slane %v179, %v189
    %192 = vbcast.lane.b32.xlu0 %v190, 256
    %v193 = vpop.permute.xlu0 %192
    %v194 = vlaneseq
    %v195 = vshrl.u32 %v194, 7
    %v196 = vsub.s32 2, %v195
    %v197 = vrot.slane %v179, %v196
    %199 = vbcast.lane.b32.xlu0 %v197, 256
    %v200 = vpop.permute.xlu0 %199
    %v201 = vlaneseq
    %v202 = vshrl.u32 %v201, 7
    %v203 = vsub.s32 3, %v202
    %v204 = vrot.slane %v179, %v203
    %206 = vbcast.lane.b32.xlu0 %v204, 256
    %v207 = vpop.permute.xlu0 %206
    %v208 = vlaneseq
    %v209 = vshrl.u32 %v208, 7
    %v210 = vsub.s32 4, %v209
    %v211 = vrot.slane %v179, %v210
    %213 = vbcast.lane.b32.xlu0 %v211, 256
    %v214 = vpop.permute.xlu0 %213
    %v215 = vlaneseq
    %v216 = vshrl.u32 %v215, 7
    %v217 = vsub.s32 5, %v216
    %v218 = vrot.slane %v179, %v217
    %220 = vbcast.lane.b32.xlu0 %v218, 256
    %v221 = vpop.permute.xlu0 %220
    %v222 = vlaneseq
    %v223 = vshrl.u32 %v222, 7
    %v224 = vsub.s32 6, %v223
    %v225 = vrot.slane %v179, %v224
    %227 = vbcast.lane.b32.xlu0 %v225, 256
    %v228 = vpop.permute.xlu0 %227
    %v229 = vlaneseq
    %v230 = vshrl.u32 %v229, 7
    %v231 = vsub.s32 7, %v230
    %v232 = vrot.slane %v179, %v231
    %234 = vbcast.lane.b32.xlu0 %v232, 256
    %v235 = vpop.permute.xlu0 %234
    %v236 = vadd.f32 %v149, %v186
    %v237 = vadd.f32 %v152, %v193
    %v238 = vadd.f32 %v157, %v200
    %v239 = vadd.f32 %v160, %v207
    %v240 = vadd.f32 %v165, %v214
    %v241 = vadd.f32 %v168, %v221
    %v242 = vadd.f32 %v173, %v228
    %v243 = vadd.f32 %v176, %v235
    %vm244 = vcmask 64512
    %v245 = vsel %vm244, %v236, -inf
    %v246 = vrot.slane %v245, 4
    %v247 = vmax.f32 %v245, %v246
    %v248 = vrot.slane %v247, 2
    %v249 = vmax.f32 %v247, %v248
    %v250 = vrot.slane %v249, 1
    %v251 = vmax.f32 %v249, %v250
    %v252 = vsel %vm244, %v237, -inf
    %v253 = vrot.slane %v252, 4
    %v254 = vmax.f32 %v252, %v253
    %v255 = vrot.slane %v254, 2
    %v256 = vmax.f32 %v254, %v255
    %v257 = vrot.slane %v256, 1
    %v258 = vmax.f32 %v256, %v257
    %v259 = vsel %vm244, %v238, -inf
    %v260 = vrot.slane %v259, 4
    %v261 = vmax.f32 %v259, %v260
    %v262 = vrot.slane %v261, 2
    %v263 = vmax.f32 %v261, %v262
    %v264 = vrot.slane %v263, 1
    %v265 = vmax.f32 %v263, %v264
    %v266 = vsel %vm244, %v239, -inf
    %v267 = vrot.slane %v266, 4
    %v268 = vmax.f32 %v266, %v267
    %v269 = vrot.slane %v268, 2
    %v270 = vmax.f32 %v268, %v269
    %v271 = vrot.slane %v270, 1
    %v272 = vmax.f32 %v270, %v271
    %v273 = vsel %vm244, %v240, -inf
    %v274 = vrot.slane %v273, 4
    %v275 = vmax.f32 %v273, %v274
    %v276 = vrot.slane %v275, 2
    %v277 = vmax.f32 %v275, %v276
    %v278 = vrot.slane %v277, 1
    %v279 = vmax.f32 %v277, %v278
    %v280 = vsel %vm244, %v241, -inf
    %v281 = vrot.slane %v280, 4
    %v282 = vmax.f32 %v280, %v281
    %v283 = vrot.slane %v282, 2
    %v284 = vmax.f32 %v282, %v283
    %v285 = vrot.slane %v284, 1
    %v286 = vmax.f32 %v284, %v285
    %v287 = vsel %vm244, %v242, -inf
    %v288 = vrot.slane %v287, 4
    %v289 = vmax.f32 %v287, %v288
    %v290 = vrot.slane %v289, 2
    %v291 = vmax.f32 %v289, %v290
    %v292 = vrot.slane %v291, 1
    %v293 = vmax.f32 %v291, %v292
    %v294 = vsel %vm244, %v243, -inf
    %v295 = vrot.slane %v294, 4
    %v296 = vmax.f32 %v294, %v295
    %v297 = vrot.slane %v296, 2
    %v298 = vmax.f32 %v296, %v297
    %v299 = vrot.slane %v298, 1
    %v300 = vmax.f32 %v298, %v299
    %v301 = vld [vmem:[#allocation2] sm:$0xff]
    %vm310 = vcmask 1041409
    %v311 = vsel %vm310, %v258, %v251
    %vm312 = vcmask 1042434
    %v313 = vsel %vm312, %v265, %v311
    %vm314 = vcmask 1043459
    %v315 = vsel %vm314, %v272, %v313
    %vm316 = vcmask 1044484
    %v317 = vsel %vm316, %v279, %v315
    %vm318 = vcmask 1045509
    %v319 = vsel %vm318, %v286, %v317
    %vm320 = vcmask 1046534
    %v321 = vsel %vm320, %v293, %v319
    %vm322 = vcmask 1047559
    %v323 = vsel %vm322, %v300, %v321
    %v325 = vmax.f32 %v301, %v323
    %v326 = vsub.f32 %v301, %v325
    %v327 = vmul.f32 %v326, 1.442695
    %v328 = vpow.pop %v327
    %v330 = vcombine.high %v325, %v325
    %v332 = vunpack.c.l.s4 1966171168
    %v333 = vunpack.c.0.s8 %v332
    %v334 = vlaneseq
    %v335 = vshrl.u32 %v334, 7
    %v336 = vsub.s32 %v333, %v335
    %v337 = vrot.slane %v325, %v336
    %v339 = vunpack.c.l.s4 1966171168
    %v340 = vunpack.c.0.s8 %v339
    %v341 = vlaneseq
    %v342 = vshrl.u32 %v341, 7
    %v343 = vsub.s32 %v340, %v342
    %v344 = vrot.slane %v330, %v343
    %v345 = vcombine.high %v337, %v337
    %v346 = vcombine.high %v344, %v344
    %v348 = vunpack.c.l.s4 1966171168
    %v349 = vunpack.c.0.s8 %v348
    %v350 = vlaneseq
    %v351 = vshrl.u32 %v350, 7
    %v352 = vsub.s32 %v349, %v351
    %v353 = vrot.slane %v337, %v352
    %v355 = vunpack.c.l.s4 1966171168
    %v356 = vunpack.c.0.s8 %v355
    %v357 = vlaneseq
    %v358 = vshrl.u32 %v357, 7
    %v359 = vsub.s32 %v356, %v358
    %v360 = vrot.slane %v344, %v359
    %v362 = vunpack.c.l.s4 1966171168
    %v363 = vunpack.c.0.s8 %v362
    %v364 = vlaneseq
    %v365 = vshrl.u32 %v364, 7
    %v366 = vsub.s32 %v363, %v365
    %v367 = vrot.slane %v345, %v366
    %v369 = vunpack.c.l.s4 1966171168
    %v370 = vunpack.c.0.s8 %v369
    %v371 = vlaneseq
    %v372 = vshrl.u32 %v371, 7
    %v373 = vsub.s32 %v370, %v372
    %v374 = vrot.slane %v346, %v373
    %v375 = vcombine.high %v353, %v353
    %v376 = vcombine.high %v360, %v360
    %v377 = vcombine.high %v367, %v367
    %v378 = vcombine.high %v374, %v374
    %v379 = vlaneseq
    %v380 = vshrl.u32 %v379, 7
    %v381 = vsub.s32 0, %v380
    %v382 = vrot.slane %v353, %v381
    %v383 = vlaneseq
    %v384 = vshrl.u32 %v383, 7
    %v385 = vsub.s32 0, %v384
    %v386 = vrot.slane %v367, %v385
    %v387 = vlaneseq
    %v388 = vshrl.u32 %v387, 7
    %v389 = vsub.s32 0, %v388
    %v390 = vrot.slane %v375, %v389
    %v391 = vlaneseq
    %v392 = vshrl.u32 %v391, 7
    %v393 = vsub.s32 0, %v392
    %v394 = vrot.slane %v377, %v393
    %v395 = vlaneseq
    %v396 = vshrl.u32 %v395, 7
    %v397 = vsub.s32 0, %v396
    %v398 = vrot.slane %v360, %v397
    %v399 = vlaneseq
    %v400 = vshrl.u32 %v399, 7
    %v401 = vsub.s32 0, %v400
    %v402 = vrot.slane %v374, %v401
    %v403 = vlaneseq
    %v404 = vshrl.u32 %v403, 7
    %v405 = vsub.s32 0, %v404
    %v406 = vrot.slane %v376, %v405
    %v407 = vlaneseq
    %v408 = vshrl.u32 %v407, 7
    %v409 = vsub.s32 0, %v408
    %v410 = vrot.slane %v378, %v409
    %v419 = vsub.f32 %v236, %v382
    %v420 = vsub.f32 %v237, %v386
    %v421 = vsub.f32 %v238, %v390
    %v422 = vsub.f32 %v239, %v394
    %v423 = vsub.f32 %v240, %v398
    %v424 = vsub.f32 %v241, %v402
    %v425 = vsub.f32 %v242, %v406
    %v426 = vsub.f32 %v243, %v410
    %v427 = vmul.f32 %v419, 1.442695
    %v428 = vpow.pop %v427
    %v429 = vmul.f32 %v420, 1.442695
    %v430 = vpow.pop %v429
    %v431 = vmul.f32 %v421, 1.442695
    %v432 = vpow.pop %v431
    %v433 = vmul.f32 %v422, 1.442695
    %v434 = vpow.pop %v433
    %v435 = vmul.f32 %v423, 1.442695
    %v436 = vpow.pop %v435
    %v437 = vmul.f32 %v424, 1.442695
    %v438 = vpow.pop %v437
    %v439 = vmul.f32 %v425, 1.442695
    %v440 = vpow.pop %v439
    %v441 = vmul.f32 %v426, 1.442695
    %v442 = vpow.pop %v441
    %v443 = vld [vmem:[#allocation3] sm:$0xff]
    %v444 = vmul.f32 %v328, %v443
    %v445 = vsel %vm244, %v428, 0.0
    %v446 = vrot.slane %v445, 4
    %v447 = vadd.f32 %v445, %v446
    %v448 = vrot.slane %v447, 2
    %v449 = vadd.f32 %v447, %v448
    %v450 = vrot.slane %v449, 1
    %v451 = vadd.f32 %v449, %v450
    %v452 = vsel %vm244, %v430, 0.0
    %v453 = vrot.slane %v452, 4
    %v454 = vadd.f32 %v452, %v453
    %v455 = vrot.slane %v454, 2
    %v456 = vadd.f32 %v454, %v455
    %v457 = vrot.slane %v456, 1
    %v458 = vadd.f32 %v456, %v457
    %v459 = vsel %vm244, %v432, 0.0
    %v460 = vrot.slane %v459, 4
    %v461 = vadd.f32 %v459, %v460
    %v462 = vrot.slane %v461, 2
    %v463 = vadd.f32 %v461, %v462
    %v464 = vrot.slane %v463, 1
    %v465 = vadd.f32 %v463, %v464
    %v466 = vsel %vm244, %v434, 0.0
    %v467 = vrot.slane %v466, 4
    %v468 = vadd.f32 %v466, %v467
    %v469 = vrot.slane %v468, 2
    %v470 = vadd.f32 %v468, %v469
    %v471 = vrot.slane %v470, 1
    %v472 = vadd.f32 %v470, %v471
    %v473 = vsel %vm244, %v436, 0.0
    %v474 = vrot.slane %v473, 4
    %v475 = vadd.f32 %v473, %v474
    %v476 = vrot.slane %v475, 2
    %v477 = vadd.f32 %v475, %v476
    %v478 = vrot.slane %v477, 1
    %v479 = vadd.f32 %v477, %v478
    %v480 = vsel %vm244, %v438, 0.0
    %v481 = vrot.slane %v480, 4
    %v482 = vadd.f32 %v480, %v481
    %v483 = vrot.slane %v482, 2
    %v484 = vadd.f32 %v482, %v483
    %v485 = vrot.slane %v484, 1
    %v486 = vadd.f32 %v484, %v485
    %v487 = vsel %vm244, %v440, 0.0
    %v488 = vrot.slane %v487, 4
    %v489 = vadd.f32 %v487, %v488
    %v490 = vrot.slane %v489, 2
    %v491 = vadd.f32 %v489, %v490
    %v492 = vrot.slane %v491, 1
    %v493 = vadd.f32 %v491, %v492
    %v494 = vsel %vm244, %v442, 0.0
    %v495 = vrot.slane %v494, 4
    %v496 = vadd.f32 %v494, %v495
    %v497 = vrot.slane %v496, 2
    %v498 = vadd.f32 %v496, %v497
    %v499 = vrot.slane %v498, 1
    %v500 = vadd.f32 %v498, %v499
    %v509 = vsel %vm310, %v458, %v451
    %v510 = vsel %vm312, %v465, %v509
    %v511 = vsel %vm314, %v472, %v510
    %v512 = vsel %vm316, %v479, %v511
    %v513 = vsel %vm318, %v486, %v512
    %v514 = vsel %vm320, %v493, %v513
    %v515 = vsel %vm322, %v500, %v514
    %v517 = vadd.f32 %v444, %v515
    %518 = vst.msk [vmem:[#allocation3] sm:$0xff] %vm244, %v517
    %519 = vst.msk [vmem:[#allocation2] sm:$0xff] %vm244, %v325
    %v520 = vld [vmem:[#allocation8] sm:$0xff]
    %v521 = vpack.c.bf16 %v520, %v520
    %v522 = vld [vmem:[%s3] sm:$0xf]
    %v523 = vld [vmem:[%s3 + $0x4] sm:$0xf]
    %v524 = vld [vmem:[%s3 + $0x8] sm:$0xf]
    %v525 = vld [vmem:[%s3 + $0xc] sm:$0xf]
    %v530 = vunpack.c.l.b16 %v522
    %v531 = vunpack.c.l.b16 %v523
    %v532 = vunpack.c.l.b16 %v524
    %v533 = vunpack.c.l.b16 %v525
    %v534 = vpack.c.b16 %v531, %v530
    %v535 = vpack.c.b16 %v533, %v532
    %538 = vmatprep.subr.bf16.mxu0 0
    %539 = vmatpush1.bf16.msra.mxu0 0
    %540 = vmatprep.subr.bf16.mxu0 0
    %541 = vmatpush1.bf16.msra.mxu0 0
    %542 = vmatprep.subr.bf16.mxu0 0
    %543 = vmatpush1.bf16.msra.mxu0 0
    %544 = vmatprep.subr.bf16.mxu0 0
    %545 = vmatpush1.bf16.msra.mxu0 0
    %546 = vmatprep.subr.bf16.mxu0 0
    %547 = vmatpush1.bf16.msra.mxu0 0
    %548 = vmatprep.subr.bf16.mxu0 0
    %549 = vmatpush1.bf16.msra.mxu0 0
    %550 = vmatprep.subr.bf16.mxu0 0
    %551 = vmatpush1.bf16.msra.mxu0 %v535
    %552 = vmatprep.subr.bf16.mxu0 0
    %553 = vmatpush1.bf16.msra.mxu0 %v534
    %554 = vmatprep.subr.bf16.mxu0 0
    %555 = vmatpush2.bf16.msra.mxu0 0
    %556 = vmatprep.subr.bf16.mxu0 0
    %557 = vmatpush2.bf16.msra.mxu0 0
    %558 = vmatprep.subr.bf16.mxu0 0
    %559 = vmatpush2.bf16.msra.mxu0 0
    %560 = vmatprep.subr.bf16.mxu0 0
    %561 = vmatpush2.bf16.msra.mxu0 0
    %562 = vmatprep.subr.bf16.mxu0 0
    %563 = vmatpush2.bf16.msra.mxu0 0
    %564 = vmatprep.subr.bf16.mxu0 0
    %565 = vmatpush2.bf16.msra.mxu0 0
    %566 = vmatprep.subr.bf16.mxu0 0
    %567 = vmatpush2.bf16.msra.mxu0 0
    %568 = vmatprep.subr.bf16.mxu0 0
    %569 = vmatpush2.bf16.msra.mxu0 0
    %570 = vmatprep.mubr.bf16.mxu0 0
    %571 = vmatmul.mubr.bf16.gmra.mxu0 %v103
    %v572 = vpop.f32.mrf.mxu0
    %v573 = vadd.f32 0.0, %v572
    %v574 = vpop.f32.mrf.mxu0
    %v575 = vpop.f32.mrf.mxu0
    %v576 = vadd.f32 0.0, %v575
    %v577 = vpop.f32.mrf.mxu0
    %578 = vmatprep.mubr.bf16.mxu0 0
    %579 = vmatmul.mubr.bf16.gmra.mxu0 %v106
    %v580 = vpop.f32.mrf.mxu0
    %v581 = vadd.f32 0.0, %v580
    %v582 = vpop.f32.mrf.mxu0
    %v583 = vpop.f32.mrf.mxu0
    %v584 = vadd.f32 0.0, %v583
    %v585 = vpop.f32.mrf.mxu0
    %586 = vmatprep.mubr.bf16.mxu0 0
    %587 = vmatmul.mubr.bf16.gmra.mxu0 %v109
    %v588 = vpop.f32.mrf.mxu0
    %v589 = vadd.f32 0.0, %v588
    %v590 = vpop.f32.mrf.mxu0
    %v591 = vpop.f32.mrf.mxu0
    %v592 = vadd.f32 0.0, %v591
    %v593 = vpop.f32.mrf.mxu0
    %594 = vmatprep.mubr.bf16.mxu0 0
    %595 = vmatmul.mubr.bf16.gmra.mxu0 %v112
    %v596 = vpop.f32.mrf.mxu0
    %v597 = vadd.f32 0.0, %v596
    %v598 = vpop.f32.mrf.mxu0
    %v599 = vpop.f32.mrf.mxu0
    %v600 = vadd.f32 0.0, %v599
    %v601 = vpop.f32.mrf.mxu0
    %602 = vdwg.mxu0
    %v603 = vpack.c.bf16 %v430, %v428
    %v604 = vpack.c.bf16 %v434, %v432
    %v605 = vpack.c.bf16 %v438, %v436
    %v606 = vpack.c.bf16 %v442, %v440
    %v608 = vsel %vm244, %v603, 0
    %v611 = vsel %vm244, %v604, 0
    %v614 = vsel %vm244, %v605, 0
    %v617 = vsel %vm244, %v606, 0
    %vm619 = vcmask 1043456
    %v621 = vsel %vm619, %v521, 0
    %623 = vmatprep.subr.bf16.mxu0 0
    %624 = vmatpush1.bf16.msra.mxu0 0
    %625 = vmatprep.subr.bf16.mxu0 0
    %626 = vmatpush1.bf16.msra.mxu0 0
    %627 = vmatprep.subr.bf16.mxu0 0
    %628 = vmatpush1.bf16.msra.mxu0 0
    %629 = vmatprep.subr.bf16.mxu0 0
    %630 = vmatpush1.bf16.msra.mxu0 0
    %631 = vmatprep.subr.bf16.mxu0 0
    %632 = vmatpush1.bf16.msra.mxu0 0
    %633 = vmatprep.subr.bf16.mxu0 0
    %634 = vmatpush1.bf16.msra.mxu0 0
    %635 = vmatprep.subr.bf16.mxu0 0
    %636 = vmatpush1.bf16.msra.mxu0 0
    %637 = vmatprep.subr.bf16.mxu0 0
    %638 = vmatpush1.bf16.msra.mxu0 %v621
    %639 = vmatprep.subr.bf16.mxu0 0
    %640 = vmatpush2.bf16.msra.mxu0 0
    %641 = vmatprep.subr.bf16.mxu0 0
    %642 = vmatpush2.bf16.msra.mxu0 0
    %643 = vmatprep.subr.bf16.mxu0 0
    %644 = vmatpush2.bf16.msra.mxu0 0
    %645 = vmatprep.subr.bf16.mxu0 0
    %646 = vmatpush2.bf16.msra.mxu0 0
    %647 = vmatprep.subr.bf16.mxu0 0
    %648 = vmatpush2.bf16.msra.mxu0 0
    %649 = vmatprep.subr.bf16.mxu0 0
    %650 = vmatpush2.bf16.msra.mxu0 0
    %651 = vmatprep.subr.bf16.mxu0 0
    %652 = vmatpush2.bf16.msra.mxu0 0
    %653 = vmatprep.subr.bf16.mxu0 0
    %654 = vmatpush2.bf16.msra.mxu0 0
    %655 = vmatprep.mubr.bf16.mxu0 0
    %656 = vmatmul.mubr.bf16.gmra.mxu0 %v608
    %v657 = vpop.f32.mrf.mxu0
    %v658 = vadd.f32 0.0, %v657
    %v659 = vpop.f32.mrf.mxu0
    %v660 = vpop.f32.mrf.mxu0
    %v661 = vadd.f32 0.0, %v660
    %v662 = vpop.f32.mrf.mxu0
    %663 = vmatprep.mubr.bf16.mxu0 0
    %664 = vmatmul.mubr.bf16.gmra.mxu0 %v611
    %v665 = vpop.f32.mrf.mxu0
    %v666 = vadd.f32 0.0, %v665
    %v667 = vpop.f32.mrf.mxu0
    %v668 = vpop.f32.mrf.mxu0
    %v669 = vadd.f32 0.0, %v668
    %v670 = vpop.f32.mrf.mxu0
    %671 = vmatprep.mubr.bf16.mxu0 0
    %672 = vmatmul.mubr.bf16.gmra.mxu0 %v614
    %v673 = vpop.f32.mrf.mxu0
    %v674 = vadd.f32 0.0, %v673
    %v675 = vpop.f32.mrf.mxu0
    %v676 = vpop.f32.mrf.mxu0
    %v677 = vadd.f32 0.0, %v676
    %v678 = vpop.f32.mrf.mxu0
    %679 = vmatprep.mubr.bf16.mxu0 0
    %680 = vmatmul.mubr.bf16.gmra.mxu0 %v617
    %v681 = vpop.f32.mrf.mxu0
    %v682 = vadd.f32 0.0, %v681
    %v683 = vpop.f32.mrf.mxu0
    %v684 = vpop.f32.mrf.mxu0
    %v685 = vadd.f32 0.0, %v684
    %v686 = vpop.f32.mrf.mxu0
    %687 = vdwg.mxu0
    %v688 = vmul.f32 %v658, %v573
    %v689 = vmul.f32 %v661, %v576
    %v690 = vmul.f32 %v666, %v581
    %v691 = vmul.f32 %v669, %v584
    %v692 = vmul.f32 %v674, %v589
    %v693 = vmul.f32 %v677, %v592
    %v694 = vmul.f32 %v682, %v597
    %v695 = vmul.f32 %v685, %v600
    %v696 = vsel %vm101, %v688, 0.0
    %v697 = vrot.slane %v696, 4
    %v698 = vadd.f32 %v696, %v697
    %v699 = vrot.slane %v698, 2
    %v700 = vadd.f32 %v698, %v699
    %v701 = vrot.slane %v700, 1
    %v702 = vadd.f32 %v700, %v701
    %v703 = vsel %vm101, %v689, 0.0
    %v704 = vrot.slane %v703, 4
    %v705 = vadd.f32 %v703, %v704
    %v706 = vrot.slane %v705, 2
    %v707 = vadd.f32 %v705, %v706
    %v708 = vrot.slane %v707, 1
    %v709 = vadd.f32 %v707, %v708
    %v710 = vsel %vm101, %v690, 0.0
    %v711 = vrot.slane %v710, 4
    %v712 = vadd.f32 %v710, %v711
    %v713 = vrot.slane %v712, 2
    %v714 = vadd.f32 %v712, %v713
    %v715 = vrot.slane %v714, 1
    %v716 = vadd.f32 %v714, %v715
    %v717 = vsel %vm101, %v691, 0.0
    %v718 = vrot.slane %v717, 4
    %v719 = vadd.f32 %v717, %v718
    %v720 = vrot.slane %v719, 2
    %v721 = vadd.f32 %v719, %v720
    %v722 = vrot.slane %v721, 1
    %v723 = vadd.f32 %v721, %v722
    %v724 = vsel %vm101, %v692, 0.0
    %v725 = vrot.slane %v724, 4
    %v726 = vadd.f32 %v724, %v725
    %v727 = vrot.slane %v726, 2
    %v728 = vadd.f32 %v726, %v727
    %v729 = vrot.slane %v728, 1
    %v730 = vadd.f32 %v728, %v729
    %v731 = vsel %vm101, %v693, 0.0
    %v732 = vrot.slane %v731, 4
    %v733 = vadd.f32 %v731, %v732
    %v734 = vrot.slane %v733, 2
    %v735 = vadd.f32 %v733, %v734
    %v736 = vrot.slane %v735, 1
    %v737 = vadd.f32 %v735, %v736
    %v738 = vsel %vm101, %v694, 0.0
    %v739 = vrot.slane %v738, 4
    %v740 = vadd.f32 %v738, %v739
    %v741 = vrot.slane %v740, 2
    %v742 = vadd.f32 %v740, %v741
    %v743 = vrot.slane %v742, 1
    %v744 = vadd.f32 %v742, %v743
    %v745 = vsel %vm101, %v695, 0.0
    %v746 = vrot.slane %v745, 4
    %v747 = vadd.f32 %v745, %v746
    %v748 = vrot.slane %v747, 2
    %v749 = vadd.f32 %v747, %v748
    %v750 = vrot.slane %v749, 1
    %v751 = vadd.f32 %v749, %v750
    %v753 = vsel %vm244, %v328, 0
    %755 = vmatprep.subr.mxu0 0.0
    %756 = vmatpush1.msra.mxu0 0.0
    %757 = vmatprep.subr.mxu0 0.0
    %758 = vmatpush1.msra.mxu0 0.0
    %759 = vmatprep.subr.mxu0 0.0
    %760 = vmatpush1.msra.mxu0 0.0
    %761 = vmatprep.subr.mxu0 0.0
    %762 = vmatpush1.msra.mxu0 0.0
    %763 = vmatprep.subr.mxu0 0.0
    %764 = vmatpush1.msra.mxu0 0.0
    %765 = vmatprep.subr.mxu0 0.0
    %766 = vmatpush1.msra.mxu0 0.0
    %767 = vmatprep.subr.mxu0 0.0
    %768 = vmatpush1.msra.mxu0 0.0
    %769 = vmatprep.subr.mxu0 0.0
    %770 = vmatpush1.msra.mxu0 0.0
    %771 = vmatprep.subr.mxu0 0.0
    %772 = vmatpush1.msra.mxu0 0.0
    %773 = vmatprep.subr.mxu0 0.0
    %774 = vmatpush1.msra.mxu0 0.0
    %775 = vmatprep.subr.mxu0 0.0
    %776 = vmatpush1.msra.mxu0 0.0
    %777 = vmatprep.subr.mxu0 0.0
    %778 = vmatpush1.msra.mxu0 0.0
    %779 = vmatprep.subr.mxu0 0.0
    %780 = vmatpush1.msra.mxu0 0.0
    %781 = vmatprep.subr.mxu0 0.0
    %782 = vmatpush1.msra.mxu0 0.0
    %783 = vmatprep.subr.mxu0 0.0
    %784 = vmatpush1.msra.mxu0 0.0
    %785 = vmatprep.subr.mxu0 0.0
    %786 = vmatpush1.msra.mxu0 %v520
    %787 = vmatprep.subr.mxu0 0.0
    %788 = vmatpush2.msra.mxu0 0.0
    %789 = vmatprep.subr.mxu0 0.0
    %790 = vmatpush2.msra.mxu0 0.0
    %791 = vmatprep.subr.mxu0 0.0
    %792 = vmatpush2.msra.mxu0 0.0
    %793 = vmatprep.subr.mxu0 0.0
    %794 = vmatpush2.msra.mxu0 0.0
    %795 = vmatprep.subr.mxu0 0.0
    %796 = vmatpush2.msra.mxu0 0.0
    %797 = vmatprep.subr.mxu0 0.0
    %798 = vmatpush2.msra.mxu0 0.0
    %799 = vmatprep.subr.mxu0 0.0
    %800 = vmatpush2.msra.mxu0 0.0
    %801 = vmatprep.subr.mxu0 0.0
    %802 = vmatpush2.msra.mxu0 0.0
    %803 = vmatprep.subr.mxu0 0.0
    %804 = vmatpush2.msra.mxu0 0.0
    %805 = vmatprep.subr.mxu0 0.0
    %806 = vmatpush2.msra.mxu0 0.0
    %807 = vmatprep.subr.mxu0 0.0
    %808 = vmatpush2.msra.mxu0 0.0
    %809 = vmatprep.subr.mxu0 0.0
    %810 = vmatpush2.msra.mxu0 0.0
    %811 = vmatprep.subr.mxu0 0.0
    %812 = vmatpush2.msra.mxu0 0.0
    %813 = vmatprep.subr.mxu0 0.0
    %814 = vmatpush2.msra.mxu0 0.0
    %815 = vmatprep.subr.mxu0 0.0
    %816 = vmatpush2.msra.mxu0 0.0
    %817 = vmatprep.subr.mxu0 0.0
    %818 = vmatpush2.msra.mxu0 0.0
    %819 = vmatprep.mubr.f32.mxu0 0.0
    %820 = vmatmul.mubr.f32.gmra.mxu0 %v753
    %v821 = vpop.f32.mrf.mxu0
    %v822 = vadd.f32 0.0, %v821
    %v823 = vpop.f32.mrf.mxu0
    %824 = vdwg.mxu0
    %v825 = vld [vmem:[#allocation4] sm:$0xff]
    %v826 = vmul.f32 %v822, %v825
    %v835 = vsel %vm310, %v709, %v702
    %v836 = vsel %vm312, %v716, %v835
    %v837 = vsel %vm314, %v723, %v836
    %v838 = vsel %vm316, %v730, %v837
    %v839 = vsel %vm318, %v737, %v838
    %v840 = vsel %vm320, %v744, %v839
    %v841 = vsel %vm322, %v751, %v840
    %v843 = vadd.f32 %v826, %v841
    %844 = vst.msk [vmem:[#allocation4] sm:$0xff] %vm101, %v843
    // Predicated region
    $region34: #{tpu_custom_call.1} parent=1 // pred_check
      %p845 = pneg %p48
    $region35: #{tpu_custom_call.1} parent=1 // pred_check_branch
      %847 = sbr.rel (%p845) target = $region37
    $region36: #{tpu_custom_call.1} parent=1 // pred_region
      %v848 = vld [vmem:[#allocation3] sm:$0xff]
      %v849 = vrcp.pop %v848
      %v851 = vsel %vm244, %v849, 0
      %853 = vmatprep.subr.mxu0 0.0
      %854 = vmatpush1.msra.mxu0 0.0
      %855 = vmatprep.subr.mxu0 0.0
      %856 = vmatpush1.msra.mxu0 0.0
      %857 = vmatprep.subr.mxu0 0.0
      %858 = vmatpush1.msra.mxu0 0.0
      %859 = vmatprep.subr.mxu0 0.0
      %860 = vmatpush1.msra.mxu0 0.0
      %861 = vmatprep.subr.mxu0 0.0
      %862 = vmatpush1.msra.mxu0 0.0
      %863 = vmatprep.subr.mxu0 0.0
      %864 = vmatpush1.msra.mxu0 0.0
      %865 = vmatprep.subr.mxu0 0.0
      %866 = vmatpush1.msra.mxu0 0.0
      %867 = vmatprep.subr.mxu0 0.0
      %868 = vmatpush1.msra.mxu0 0.0
      %869 = vmatprep.subr.mxu0 0.0
      %870 = vmatpush1.msra.mxu0 0.0
      %871 = vmatprep.subr.mxu0 0.0
      %872 = vmatpush1.msra.mxu0 0.0
      %873 = vmatprep.subr.mxu0 0.0
      %874 = vmatpush1.msra.mxu0 0.0
      %875 = vmatprep.subr.mxu0 0.0
      %876 = vmatpush1.msra.mxu0 0.0
      %877 = vmatprep.subr.mxu0 0.0
      %878 = vmatpush1.msra.mxu0 0.0
      %879 = vmatprep.subr.mxu0 0.0
      %880 = vmatpush1.msra.mxu0 0.0
      %881 = vmatprep.subr.mxu0 0.0
      %882 = vmatpush1.msra.mxu0 0.0
      %883 = vmatprep.subr.mxu0 0.0
      %884 = vmatpush1.msra.mxu0 %v520
      %885 = vmatprep.subr.mxu0 0.0
      %886 = vmatpush2.msra.mxu0 0.0
      %887 = vmatprep.subr.mxu0 0.0
      %888 = vmatpush2.msra.mxu0 0.0
      %889 = vmatprep.subr.mxu0 0.0
      %890 = vmatpush2.msra.mxu0 0.0
      %891 = vmatprep.subr.mxu0 0.0
      %892 = vmatpush2.msra.mxu0 0.0
      %893 = vmatprep.subr.mxu0 0.0
      %894 = vmatpush2.msra.mxu0 0.0
      %895 = vmatprep.subr.mxu0 0.0
      %896 = vmatpush2.msra.mxu0 0.0
      %897 = vmatprep.subr.mxu0 0.0
      %898 = vmatpush2.msra.mxu0 0.0
      %899 = vmatprep.subr.mxu0 0.0
      %900 = vmatpush2.msra.mxu0 0.0
      %901 = vmatprep.subr.mxu0 0.0
      %902 = vmatpush2.msra.mxu0 0.0
      %903 = vmatprep.subr.mxu0 0.0
      %904 = vmatpush2.msra.mxu0 0.0
      %905 = vmatprep.subr.mxu0 0.0
      %906 = vmatpush2.msra.mxu0 0.0
      %907 = vmatprep.subr.mxu0 0.0
      %908 = vmatpush2.msra.mxu0 0.0
      %909 = vmatprep.subr.mxu0 0.0
      %910 = vmatpush2.msra.mxu0 0.0
      %911 = vmatprep.subr.mxu0 0.0
      %912 = vmatpush2.msra.mxu0 0.0
      %913 = vmatprep.subr.mxu0 0.0
      %914 = vmatpush2.msra.mxu0 0.0
      %915 = vmatprep.subr.mxu0 0.0
      %916 = vmatpush2.msra.mxu0 0.0
      %917 = vmatprep.mubr.f32.mxu0 0.0
      %918 = vmatmul.mubr.f32.gmra.mxu0 %v851
      %v919 = vpop.f32.mrf.mxu0
      %v920 = vadd.f32 0.0, %v919
      %v921 = vpop.f32.mrf.mxu0
      %922 = vdwg.mxu0
      %v923 = vld [vmem:[#allocation4] sm:$0xff]
      %v924 = vmul.f32 %v923, %v920
      %925 = vst.msk [vmem:[#allocation10] sm:$0xff] %vm101, %v924
    $region37: #{tpu_custom_call.1} parent=1 // pred_fallthru
      _
    // Predicated region
    $region38: #{tpu_custom_call.1} parent=1 // pred_check
      _
    $region39: #{tpu_custom_call.1} parent=1 // pred_check_branch
      %927 = sbr.rel (0) target = $region41
    $region40: #{tpu_custom_call.1} parent=1 // pred_region
      %s929 = ssub.s32 128, 128
      %930 = vsyncadd [#allocation7], %s929
      %s932 = sshll.u32 [#allocation10], 4
      %s933 = int_to_ptr.vmem [resolvable:$true] %s932
      %935 = dma.vmem_to_hbm [thread:$0]  %s933, 128, %s5, [#allocation7]
    $region41: #{tpu_custom_call.1} parent=1 // pred_fallthru
      _
    // Predicated region
    $region42: #{tpu_custom_call.1} parent=1 // pred_check
      _
    $region43: #{tpu_custom_call.1} parent=1 // pred_check_branch
      %937 = sbr.rel (0) target = $region45
    $region44: #{tpu_custom_call.1} parent=1 // pred_region
      %938 = dma.done [#allocation7], 128
    $region45: #{tpu_custom_call.1} parent=1 // pred_fallthru
      _
    %939 = vsyncpa [#allocation6], 1
    %940 = vsyncpa [#allocation9], 1
    %941 = vsyncpa [#allocation7], 1

</llo_original>
